<compile_context>
chip_gen: v6e
topology: v6e:2x2x1
jax: 0.10.0
libtpu: 0.0.40
codegen_flags: <defaults>
</compile_context>

<pallas_src>
import functools

import jax
import jax.numpy as jnp
from jax.experimental import pallas as pl
from jax.experimental.pallas import tpu as pltpu


def _round_up(x, m):
    return (x + m - 1) // m * m


def _convnorm_kernel(xw_ref, w_ref, b_ref, o_ref, *, k, lt):
    # xw_ref: (1, 1, lt + k - 1, C_in_p)   overlapped input window (compute dtype)
    # w_ref:  (k * C_in_p, C_out_p)        fused tap-major weight (compute dtype)
    # b_ref:  (1, C_out_p)                 bias, f32
    # o_ref:  (1, lt, C_out_p)             output tile
    x = xw_ref[0, 0]                                      # (lt + k - 1, C_in_p)
    # im2col: fuse the k taps into one matmul operand of shape (lt, k*C_in_p).
    xc = jnp.concatenate([x[t:t + lt, :] for t in range(k)], axis=-1)
    acc = jnp.dot(xc, w_ref[...], preferred_element_type=jnp.float32)
    o_ref[0] = (acc + b_ref[...]).astype(o_ref.dtype)


def conv_norm_nlc(x_nlc, weight, bias, *, dilation=1, l_tile=256,
                  compute_dtype=jnp.bfloat16):
    """ConvNorm forward, NLC-native.

    x_nlc:  (N, L, C_in)
    weight: (C_out, C_in, k)   -- PyTorch Conv1d weight layout
    bias:   (C_out,)
    returns (N, L, C_out)
    """
    if dilation != 1:
        # TODO(synk): dilated taps not implemented; ConvNorm/FastSpeech2 use dilation=1.
        raise NotImplementedError("dilation != 1 not supported")

    N, L, C_in = x_nlc.shape
    C_out, _, k = weight.shape
    assert k % 2 == 1, "ConvNorm requires odd kernel_size for 'same' padding"
    pad = (k - 1) // 2
    out_dtype = x_nlc.dtype

    # Lane-pad channels to multiples of 128 (full MXU width, lane-dense stores).
    c_in_p = _round_up(C_in, 128)
    c_out_p = _round_up(C_out, 128)

    # Length tiling (bounds VMEM independent of L; tile is sublane-aligned).
    lt = _round_up(max(8, min(l_tile, _round_up(L, 8))), 8)
    l_pad = _round_up(L, lt)
    n_lt = l_pad // lt
    w_win = lt + k - 1

    # --- wrapper-side layout prep (fused by XLA into one pass over the input) ---
    x = x_nlc.astype(compute_dtype)
    x = jnp.pad(x, ((0, 0), (pad, pad + (l_pad - L)), (0, c_in_p - C_in)))
    # Overlapped windows with the k-1 halo: xw[n, t, j, c] = padded[n, t*lt + j, c]
    idx = jnp.arange(n_lt)[:, None] * lt + jnp.arange(w_win)[None, :]
    xw = x[:, idx, :]                                     # (N, n_lt, w_win, c_in_p)

    # Weight: (C_out, C_in, k) -> (k, C_in, C_out) -> pad -> (k*c_in_p, c_out_p)
    w_kic = jnp.transpose(weight, (2, 1, 0)).astype(compute_dtype)
    w_kic = jnp.pad(w_kic, ((0, 0), (0, c_in_p - C_in), (0, c_out_p - C_out)))
    w_fused = w_kic.reshape(k * c_in_p, c_out_p)

    b_2d = jnp.pad(bias.astype(jnp.float32), (0, c_out_p - C_out)).reshape(1, c_out_p)

    kernel = functools.partial(_convnorm_kernel, k=k, lt=lt)

    csz = jnp.dtype(compute_dtype).itemsize
    osz = jnp.dtype(out_dtype).itemsize
    # Rough VMEM budget: double-buffered input/weight/output blocks + in-kernel temps.
    est = (2 * w_win * c_in_p * csz
           + 2 * k * c_in_p * c_out_p * csz
           + 2 * lt * c_out_p * osz
           + lt * k * c_in_p * csz + lt * c_out_p * 4
           + 2 * c_out_p * 4)
    vmem_limit = int(min(64 * 2**20, max(16 * 2**20, 2 * est)))

    flops = 2 * N * l_pad * k * c_in_p * c_out_p
    bytes_accessed = (xw.size * csz + w_fused.size * csz + b_2d.size * 4
                      + N * l_pad * c_out_p * osz)

    out_full = pl.pallas_call(
        kernel,
        out_shape=jax.ShapeDtypeStruct((N, l_pad, c_out_p), out_dtype),
        grid_spec=pltpu.PrefetchScalarGridSpec(
            num_scalar_prefetch=0,
            grid=(N, n_lt),
            in_specs=[
                pl.BlockSpec((1, 1, w_win, c_in_p), lambda n, t: (n, t, 0, 0)),
                # Grid-invariant weight/bias (constant index_map -> fetched once).
                pl.BlockSpec((k * c_in_p, c_out_p), lambda n, t: (0, 0)),
                pl.BlockSpec((1, c_out_p), lambda n, t: (0, 0)),
            ],
            out_specs=pl.BlockSpec((1, lt, c_out_p), lambda n, t: (n, t, 0)),
        ),
        compiler_params=pltpu.CompilerParams(
            dimension_semantics=("parallel", "parallel"),
            vmem_limit_bytes=vmem_limit,
        ),
        cost_estimate=pl.CostEstimate(
            flops=flops, transcendentals=0, bytes_accessed=bytes_accessed),
    )(xw, w_fused, b_2d)

    return out_full[:, :L, :C_out]


def conv_norm(signal, weight, bias, *, dilation=1, l_tile=256,
              compute_dtype=jnp.bfloat16):
    """PyTorch-layout ConvNorm forward: signal (N, C_in, L) -> (N, C_out, L)."""
    out_nlc = conv_norm_nlc(jnp.transpose(signal, (0, 2, 1)), weight, bias,
                            dilation=dilation, l_tile=l_tile,
                            compute_dtype=compute_dtype)
    return jnp.transpose(out_nlc, (0, 2, 1))


if __name__ == "__main__":
    key = jax.random.PRNGKey(0)

    def make_case(case_key, n, c_in, c_out, length, ksz):
        k_x, k_w, k_b = jax.random.split(case_key, 3)
        signal = jax.random.normal(k_x, (n, c_in, length), dtype=jnp.float32)
        weight = jax.random.normal(k_w, (c_out, c_in, ksz), dtype=jnp.float32) * 0.1
        b = jax.random.normal(k_b, (c_out,), dtype=jnp.float32) * 0.1
        return signal, weight, b

    def torch_ref(signal, weight, b):
        c_out, _, ksz = weight.shape
        p = (ksz - 1) // 2
        y = jax.lax.conv_general_dilated(
            signal, weight, window_strides=(1,), padding=[(p, p)],
            dimension_numbers=("NCH", "OIH", "NCH"))
        return y + b.reshape(1, c_out, 1)

    key1, key2 = jax.random.split(key)
    ok = True

    # Case 1: ConvNorm(12, 20, kernel_size=5) -- multiple L tiles (halo path),
    # lane-padded channels, L not a multiple of the tile.
    sig, w, b = make_case(key1, 2, 12, 20, 40, 5)
    ref = torch_ref(sig, w, b)

    run_f32 = jax.jit(functools.partial(conv_norm, l_tile=16,
                                        compute_dtype=jnp.float32))
    out_f32 = jax.block_until_ready(run_f32(sig, w, b))
    ok &= (out_f32.shape == ref.shape)
    ok &= bool(jnp.allclose(out_f32, ref, atol=1e-4, rtol=1e-4))

    run_bf16 = jax.jit(functools.partial(conv_norm, l_tile=16,
                                         compute_dtype=jnp.bfloat16))
    out_bf16 = jax.block_until_ready(run_bf16(sig, w, b))
    ok &= bool(jnp.allclose(out_bf16, ref, atol=5e-2, rtol=5e-2))

    # Case 2: ConvNorm(8, 8, kernel_size=1) -- pointwise path (module default k).
    sig2, w2, b2 = make_case(key2, 2, 8, 8, 16, 1)
    ref2 = torch_ref(sig2, w2, b2)
    out2 = jax.block_until_ready(jax.jit(conv_norm)(sig2, w2, b2))
    ok &= bool(jnp.allclose(out2, ref2, atol=5e-2, rtol=5e-2))

    assert ok, "ConvNorm Pallas kernel mismatch vs reference conv"
    print("KERNEL_OK")
</pallas_src>

<mosaic_0001>
module attributes {stable_mosaic.version = 11 : i64} {
  func.func @_convnorm_kernel(%arg0: i32, %arg1: i32, %arg2: memref<1x1x20x128xf32, #tpu.memory_space<vmem>>, %arg3: memref<640x128xf32, #tpu.memory_space<vmem>>, %arg4: memref<1x128xf32, #tpu.memory_space<vmem>>, %arg5: memref<1x16x128xf32, #tpu.memory_space<vmem>>) attributes {dimension_semantics = [#tpu.dimension_semantics<parallel>, #tpu.dimension_semantics<parallel>], iteration_bounds = array<i64: 2, 3>, scalar_prefetch = 0 : i64, scratch_operands = 0 : i64, tpu.core_type = #tpu.core_type<tc>, window_params = [{transform_indices = @transform_0, window_bounds = array<i64: 1, 1, 20, 128>}, {pipeline_mode = #tpu.pipeline_mode<synchronous>, transform_indices = @transform_1, window_bounds = array<i64: 640, 128>}, {pipeline_mode = #tpu.pipeline_mode<synchronous>, transform_indices = @transform_2, window_bounds = array<i64: 1, 128>}, {transform_indices = @transform_3, window_bounds = array<i64: 1, 16, 128>}]} {
    %c0 = arith.constant 0 : index
    %c0_0 = arith.constant 0 : index
    %c0_1 = arith.constant 0 : index
    %c0_2 = arith.constant 0 : index
    %0 = vector.load %arg2[%c0, %c0_0, %c0_1, %c0_2] : memref<1x1x20x128xf32, #tpu.memory_space<vmem>>, vector<1x1x20x128xf32>
    %1 = vector.shape_cast %0 : vector<1x1x20x128xf32> to vector<20x128xf32>
    %2 = vector.extract_strided_slice %1 {offsets = [0, 0], sizes = [16, 128], strides = [1, 1]} : vector<20x128xf32> to vector<16x128xf32>
    %3 = vector.extract_strided_slice %1 {offsets = [1, 0], sizes = [16, 128], strides = [1, 1]} : vector<20x128xf32> to vector<16x128xf32>
    %4 = vector.extract_strided_slice %1 {offsets = [2, 0], sizes = [16, 128], strides = [1, 1]} : vector<20x128xf32> to vector<16x128xf32>
    %5 = vector.extract_strided_slice %1 {offsets = [3, 0], sizes = [16, 128], strides = [1, 1]} : vector<20x128xf32> to vector<16x128xf32>
    %6 = vector.extract_strided_slice %1 {offsets = [4, 0], sizes = [16, 128], strides = [1, 1]} : vector<20x128xf32> to vector<16x128xf32>
    %7 = tpu.concatenate %2, %3, %4, %5, %6 in 1 : vector<16x128xf32>, vector<16x128xf32>, vector<16x128xf32>, vector<16x128xf32>, vector<16x128xf32> -> vector<16x640xf32>
    %c0_3 = arith.constant 0 : index
    %c0_4 = arith.constant 0 : index
    %8 = vector.load %arg3[%c0_3, %c0_4] : memref<640x128xf32, #tpu.memory_space<vmem>>, vector<640x128xf32>
    %cst = arith.constant dense<0.000000e+00> : vector<16x128xf32>
    %9 = tpu.matmul %7, %8, %cst {dimension_numbers = #tpu.dot_dimension_numbers<[1], [0], [0], [1], [0, 0, 1, 1], [], []>} : vector<16x640xf32>, vector<640x128xf32>, vector<16x128xf32> -> vector<16x128xf32>
    %c0_5 = arith.constant 0 : index
    %c0_6 = arith.constant 0 : index
    %10 = vector.load %arg4[%c0_5, %c0_6] : memref<1x128xf32, #tpu.memory_space<vmem>>, vector<1x128xf32>
    %11 = vector.broadcast %10 : vector<1x128xf32> to vector<16x128xf32>
    %12 = arith.addf %9, %11 : vector<16x128xf32>
    %c0_7 = arith.constant 0 : index
    %c0_8 = arith.constant 0 : index
    %c0_9 = arith.constant 0 : index
    %13 = vector.load %arg5[%c0_7, %c0_8, %c0_9] : memref<1x16x128xf32, #tpu.memory_space<vmem>>, vector<1x16x128xf32>
    %14 = vector.shape_cast %13 : vector<1x16x128xf32> to vector<16x128xf32>
    %15 = vector.shape_cast %12 : vector<16x128xf32> to vector<1x16x128xf32>
    tpu.vector_store %arg5[%c0_7, %c0_8, %c0_9], %15 {strides = array<i32>} : memref<1x16x128xf32, #tpu.memory_space<vmem>>, vector<1x16x128xf32>,
    return
  }
  func.func @transform_0(%arg0: i32, %arg1: i32) -> (i32, i32, i32, i32) {
    %c0_i32 = arith.constant 0 : i32
    %c0_i32_0 = arith.constant 0 : i32
    %c0_i32_1 = arith.constant 0 : i32
    return %arg0, %arg1, %c0_i32, %c0_i32_0 : i32, i32, i32, i32
  }
  func.func @transform_1(%arg0: i32, %arg1: i32) -> (i32, i32) {
    %c0_i32 = arith.constant 0 : i32
    %c0_i32_0 = arith.constant 0 : i32
    %c0_i32_1 = arith.constant 0 : i32
    return %c0_i32, %c0_i32_0 : i32, i32
  }
  func.func @transform_2(%arg0: i32, %arg1: i32) -> (i32, i32) {
    %c0_i32 = arith.constant 0 : i32
    %c0_i32_0 = arith.constant 0 : i32
    %c0_i32_1 = arith.constant 0 : i32
    return %c0_i32, %c0_i32_0 : i32, i32
  }
  func.func @transform_3(%arg0: i32, %arg1: i32) -> (i32, i32, i32) {
    %c0_i32 = arith.constant 0 : i32
    %c0_i32_0 = arith.constant 0 : i32
    return %arg0, %arg1, %c0_i32 : i32, i32, i32
  }
}

</mosaic_0001>

<llo_original>
// kernel: conv_norm.1
$region0: #{conv_norm.1}
  #allocation0 [shape = 'u32[]', space=smem, size = 0x4, offset = 0x4, fixed_abs, tag = 'smem constant byte address 0x4 - core index']
  #allocation1 [shape = 'u32[144,128]{1,0:T(1,128)}', space=vmem, size = 0x12000, scoped, tag = 'internal scratch']
  %s0 = inlined_call_operand.vmem [shape: f32[2,3,20,128], index: 0, kind: input, shape index: {}]
  %s1 = inlined_call_operand.vmem [shape: f32[640,128], index: 1, kind: input, shape index: {}]
  %s2 = inlined_call_operand.vmem [shape: f32[1,128], index: 2, kind: input, shape index: {}]
  %s3 = inlined_call_operand.vmem [shape: f32[2,48,128], index: 3, kind: output, shape index: {}]
  %s4 = sld [smem:[#allocation0]]
  $region45: #{conv_norm.1} parent=0
    _
  %s6 = ssub.s32 1, %s4
  %s7 = scalar_select 0, %s6, %s4
  loop: start=0, step=1, limit=8
  $region2: #{conv_norm.1} parent=0 // loop_pre_header
    _
  $region3: #{conv_norm.1} parent=0 // loop_header
    %s9 = sphi 0, %s13
    %p10 = scmp.ge.s32.totalorder %s9, 8
    %s16 = sphi 0, %s28
    %s17 = sphi 0, %s24
    %s18 = sphi 0, %s16
    %s19 = sphi 0, %s17
    %s20 = sphi 0, %s18
    %s21 = sphi 0, %s19
    %s33 = sphi 0, %s35
    %s36 = sphi 0, %s33
    %s37 = sphi 0, %s36
    %s53 = sphi 0, %s37
    %s57 = sphi 0, %s57
    %s59 = sphi 0, %s57
    %s60 = sphi 0, %s59
    %s74 = sphi 0, %s60
    %s78 = sphi 0, %s78
    %s80 = sphi 0, %s78
    %s81 = sphi 0, %s80
    %s95 = sphi 0, %s81
    %s103 = sphi 0, %s105
    %s106 = sphi 0, %s103
    %s107 = sphi 0, %s106
    %s123 = sphi 0, %s107
  $region4: #{conv_norm.1} parent=0 // loop_header_branch
    %12 = sbr.rel (%p10) target = $region8
  $region5: #{conv_norm.1} parent=0 // loop_body
    %s14 = ssub.s32 %s9, 1
    %s15 = ssub.s32 %s9, 2
    %s22 = sadd.s32 1, %s17
    %p23 = scmp.ge.s32.totalorder %s22, 3
    %s24 = scalar_select %p23, 0, %s22
    %s25 = sadd.s32 1, %s16
    %s26 = scalar_select %p23, %s25, %s16
    %p27 = scmp.ge.s32.totalorder %s26, 2
    %s28 = scalar_select %p27, 0, %s26
    %s29 = ssub.s32 %s16, %s28
    %s30 = ssub.s32 %s17, %s24
    %s31 = sor.u32 %s29, %s30
    %p32 = scmp.eq.s32.totalorder %s31, 0
    %s34 = sadd.s32 %s33, 1
    %s35 = scalar_select %p32, %s33, %s34
    %p38 = pneg %p32
    %p39 = scmp.eq.s32.totalorder %s9, 5
    %p40 = por %p38, %p39
    %p41 = scmp.ne.s32.totalorder %s33, %s36
    %p42 = scmp.eq.s32.totalorder %s9, 0
    %p43 = por %p41, %p42
    %p44 = scmp.ne.s32.totalorder %s33, %s36
    %p45 = scmp.eq.s32.totalorder %s14, 5
    %p46 = por %p44, %p45
    %p47 = scmp.ne.s32.totalorder %s36, %s37
    %p48 = scmp.eq.s32.totalorder %s14, 0
    %p49 = por %p47, %p48
    %p50 = scmp.ne.s32.totalorder %s36, %s37
    %p51 = scmp.eq.s32.totalorder %s15, 5
    %p52 = por %p50, %p51
    %p54 = scmp.ne.s32.totalorder %s37, %s53
    %p55 = scmp.eq.s32.totalorder %s15, 0
    %p56 = por %p54, %p55
    %s58 = sadd.s32 %s57, 1
    %p61 = scmp.eq.s32.totalorder %s9, 5
    %p62 = scmp.ne.s32.totalorder %s57, %s59
    %p63 = scmp.eq.s32.totalorder %s9, 0
    %p64 = por %p62, %p63
    %p65 = scmp.ne.s32.totalorder %s57, %s59
    %p66 = scmp.eq.s32.totalorder %s14, 5
    %p67 = por %p65, %p66
    %p68 = scmp.ne.s32.totalorder %s59, %s60
    %p69 = scmp.eq.s32.totalorder %s14, 0
    %p70 = por %p68, %p69
    %p71 = scmp.ne.s32.totalorder %s59, %s60
    %p72 = scmp.eq.s32.totalorder %s15, 5
    %p73 = por %p71, %p72
    %p75 = scmp.ne.s32.totalorder %s60, %s74
    %p76 = scmp.eq.s32.totalorder %s15, 0
    %p77 = por %p75, %p76
    %s79 = sadd.s32 %s78, 1
    %p82 = scmp.eq.s32.totalorder %s9, 5
    %p83 = scmp.ne.s32.totalorder %s78, %s80
    %p84 = scmp.eq.s32.totalorder %s9, 0
    %p85 = por %p83, %p84
    %p86 = scmp.ne.s32.totalorder %s78, %s80
    %p87 = scmp.eq.s32.totalorder %s14, 5
    %p88 = por %p86, %p87
    %p89 = scmp.ne.s32.totalorder %s80, %s81
    %p90 = scmp.eq.s32.totalorder %s14, 0
    %p91 = por %p89, %p90
    %p92 = scmp.ne.s32.totalorder %s80, %s81
    %p93 = scmp.eq.s32.totalorder %s15, 5
    %p94 = por %p92, %p93
    %p96 = scmp.ne.s32.totalorder %s81, %s95
    %p97 = scmp.eq.s32.totalorder %s15, 0
    %p98 = por %p96, %p97
    %s99 = ssub.s32 %s16, %s28
    %s100 = ssub.s32 %s17, %s24
    %s101 = sor.u32 %s99, %s100
    %p102 = scmp.eq.s32.totalorder %s101, 0
    %s104 = sadd.s32 %s103, 1
    %s105 = scalar_select %p102, %s103, %s104
    %p108 = pneg %p102
    %p109 = scmp.eq.s32.totalorder %s9, 5
    %p110 = por %p108, %p109
    %p111 = scmp.ne.s32.totalorder %s103, %s106
    %p112 = scmp.eq.s32.totalorder %s9, 0
    %p113 = por %p111, %p112
    %p114 = scmp.ne.s32.totalorder %s103, %s106
    %p115 = scmp.eq.s32.totalorder %s14, 5
    %p116 = por %p114, %p115
    %p117 = scmp.ne.s32.totalorder %s106, %s107
    %p118 = scmp.eq.s32.totalorder %s14, 0
    %p119 = por %p117, %p118
    %p120 = scmp.ne.s32.totalorder %s106, %s107
    %p121 = scmp.eq.s32.totalorder %s15, 5
    %p122 = por %p120, %p121
    %p124 = scmp.ne.s32.totalorder %s107, %s123
    %p125 = scmp.eq.s32.totalorder %s15, 0
    %p126 = por %p124, %p125
    %p127 = scmp.le.s32.totalorder 1, %s9
    %p128 = scmp.lt.s32.totalorder %s9, 7
    %p129 = pnand %p127, %p128
    %p130 = pneg %p129
    // Predicated region
    $region9: #{conv_norm.1} parent=5 // pred_check
      _
    $region10: #{conv_norm.1} parent=5 // pred_check_branch
      %132 = sbr.rel (%p129) target = $region12
    $region11: #{conv_norm.1} parent=5 // pred_region
      %s133 = ssub.s32 %s9, 1
      // Predicated region
      $region13: #{conv_norm.1} parent=11 // pred_check
        %p134 = pneg %p70
      $region14: #{conv_norm.1} parent=11 // pred_check_branch
        %136 = sbr.rel (%p134) target = $region16
      $region15: #{conv_norm.1} parent=11 // pred_region
        _
      $region16: #{conv_norm.1} parent=11 // pred_fallthru
        _
      // Predicated region
      $region17: #{conv_norm.1} parent=11 // pred_check
        %p137 = pneg %p91
      $region18: #{conv_norm.1} parent=11 // pred_check_branch
        %139 = sbr.rel (%p137) target = $region20
      $region19: #{conv_norm.1} parent=11 // pred_region
        _
      $region20: #{conv_norm.1} parent=11 // pred_fallthru
        _
    $region12: #{conv_norm.1} parent=5 // pred_fallthru
      _
    %p140 = scmp.lt.s32.totalorder %s9, 6
    // Predicated region
    $region21: #{conv_norm.1} parent=5 // pred_check
      %p141 = pneg %p140
    $region22: #{conv_norm.1} parent=5 // pred_check_branch
      %143 = sbr.rel (%p141) target = $region24
    $region23: #{conv_norm.1} parent=5 // pred_region
      // Predicated region
      $region25: #{conv_norm.1} parent=23 // pred_check
        %p144 = pneg %p43
      $region26: #{conv_norm.1} parent=23 // pred_check_branch
        %146 = sbr.rel (%p144) target = $region28
      $region27: #{conv_norm.1} parent=23 // pred_region
        %p147 = scmp.lt.s32.totalorder %s16, 1
        %s148 = scalar_select %p147, %s16, 1
        %p149 = scmp.lt.s32.totalorder %s17, 2
        %s150 = scalar_select %p149, %s17, 2
        %s151 = smul.addr %s150, 3
        %s152 = smul.addr %s148, 9
        %s153 = sadd.s32 %s151, %s152
        %s154 = smul.addr %s153, 8
        %s155 = scalar_lea.vmem %s0, %s154
      $region28: #{conv_norm.1} parent=23 // pred_fallthru
        _
    $region24: #{conv_norm.1} parent=5 // pred_fallthru
      _
    %p156 = scmp.le.s32.totalorder 1, %s9
    %p157 = scmp.lt.s32.totalorder %s9, 7
    %p158 = pnand %p156, %p157
    %p159 = pneg %p158
    // Predicated region
    $region29: #{conv_norm.1} parent=5 // pred_check
      _
    $region30: #{conv_norm.1} parent=5 // pred_check_branch
      %161 = sbr.rel (%p158) target = $region32
    $region31: #{conv_norm.1} parent=5 // pred_region
      %s162 = ssub.s32 %s9, 1
      %p163 = scmp.lt.s32.totalorder %s18, 1
      %s164 = scalar_select %p163, %s18, 1
      %p165 = scmp.lt.s32.totalorder %s19, 2
      %s166 = scalar_select %p165, %s19, 2
      %s167 = smul.addr %s166, 3
      %s168 = smul.addr %s164, 9
      %s169 = sadd.s32 %s167, %s168
      %s170 = smul.addr %s169, 8
      %s171 = scalar_lea.vmem %s0, %s170
      %p172 = pneg %p49
      %p173 = pneg %p46
      %p174 = pneg %p70
      %p175 = pneg %p67
      %p176 = pneg %p91
      %p177 = pneg %p88
      %p178 = pneg %p119
      %p179 = pneg %p116
      %s180 = smul.u32 2, %s19
      %p181 = scmp.lt.s32.totalorder %s18, 1
      %s182 = scalar_select %p181, %s18, 1
      %p183 = scmp.lt.s32.totalorder %s180, 5
      %s184 = scalar_select %p183, %s180, 5
      %s185 = smul.addr %s182, 6
      %s186 = sadd.s32 %s184, %s185
      %s187 = smul.addr %s186, 8
      %s188 = scalar_lea.vmem %s3, %s187
      %p189 = scmp.lt.s32.totalorder %s18, 1
      %s190 = scalar_select %p189, %s18, 1
      %p191 = scmp.lt.s32.totalorder %s19, 2
      %s192 = scalar_select %p191, %s19, 2
      %s193 = smul.addr %s192, 3
      %s194 = smul.addr %s190, 9
      %s195 = sadd.s32 %s193, %s194
      %s196 = smul.addr %s195, 8
      %s197 = scalar_lea.vmem %s0, %s196
      %s198 = smul.u32 2, %s19
      %p199 = scmp.lt.s32.totalorder %s18, 1
      %s200 = scalar_select %p199, %s18, 1
      %p201 = scmp.lt.s32.totalorder %s198, 5
      %s202 = scalar_select %p201, %s198, 5
      %s203 = smul.addr %s200, 6
      %s204 = sadd.s32 %s202, %s203
      %s205 = smul.addr %s204, 8
      %s206 = scalar_lea.vmem %s3, %s205
      %s207 = smul.u32 2, %s19
      %v208 = vld [vmem:[%s197] sm:$0xff]
      %v209 = vld [vmem:[%s197 + $0x8] sm:$0xff]
      %v210 = vld [vmem:[%s197 + $0x10] sm:$0xf]
      %vm214 = vcmask 1046528
      %v215 = vrot.slane %v208, 1
      %v216 = vrot.slane %v209, 1
      %v217 = vsel %vm214, %v215, %v216
      %v218 = vrot.slane %v210, 1
      %v219 = vsel %vm214, %v216, %v218
      %vm222 = vcmask 1045504
      %v223 = vrot.slane %v208, 2
      %v224 = vrot.slane %v209, 2
      %v225 = vsel %vm222, %v223, %v224
      %v226 = vrot.slane %v210, 2
      %v227 = vsel %vm222, %v224, %v226
      %vm230 = vcmask 1044480
      %v231 = vrot.slane %v208, 3
      %v232 = vrot.slane %v209, 3
      %v233 = vsel %vm230, %v231, %v232
      %v234 = vrot.slane %v210, 3
      %v235 = vsel %vm230, %v232, %v234
      %vm238 = vcmask 1043456
      %v239 = vrot.slane %v208, 4
      %v240 = vrot.slane %v209, 4
      %v241 = vsel %vm238, %v239, %v240
      %v242 = vrot.slane %v210, 4
      %v243 = vsel %vm238, %v240, %v242
      %v246 = vld [vmem:[%s1] sm:$0xff]
      %v247 = vld [vmem:[%s1 + $0x8] sm:$0xff]
      %v248 = vld [vmem:[%s1 + $0x10] sm:$0xff]
      %v249 = vld [vmem:[%s1 + $0x18] sm:$0xff]
      %v250 = vld [vmem:[%s1 + $0x20] sm:$0xff]
      %v251 = vld [vmem:[%s1 + $0x28] sm:$0xff]
      %v252 = vld [vmem:[%s1 + $0x30] sm:$0xff]
      %v253 = vld [vmem:[%s1 + $0x38] sm:$0xff]
      %v254 = vld [vmem:[%s1 + $0x40] sm:$0xff]
      %v255 = vld [vmem:[%s1 + $0x48] sm:$0xff]
      %v256 = vld [vmem:[%s1 + $0x50] sm:$0xff]
      %v257 = vld [vmem:[%s1 + $0x58] sm:$0xff]
      %v258 = vld [vmem:[%s1 + $0x60] sm:$0xff]
      %v259 = vld [vmem:[%s1 + $0x68] sm:$0xff]
      %v260 = vld [vmem:[%s1 + $0x70] sm:$0xff]
      %v261 = vld [vmem:[%s1 + $0x78] sm:$0xff]
      %v262 = vld [vmem:[%s1 + $0x80] sm:$0xff]
      %v263 = vld [vmem:[%s1 + $0x88] sm:$0xff]
      %v264 = vld [vmem:[%s1 + $0x90] sm:$0xff]
      %v265 = vld [vmem:[%s1 + $0x98] sm:$0xff]
      %v266 = vld [vmem:[%s1 + $0xa0] sm:$0xff]
      %v267 = vld [vmem:[%s1 + $0xa8] sm:$0xff]
      %v268 = vld [vmem:[%s1 + $0xb0] sm:$0xff]
      %v269 = vld [vmem:[%s1 + $0xb8] sm:$0xff]
      %v270 = vld [vmem:[%s1 + $0xc0] sm:$0xff]
      %v271 = vld [vmem:[%s1 + $0xc8] sm:$0xff]
      %v272 = vld [vmem:[%s1 + $0xd0] sm:$0xff]
      %v273 = vld [vmem:[%s1 + $0xd8] sm:$0xff]
      %v274 = vld [vmem:[%s1 + $0xe0] sm:$0xff]
      %v275 = vld [vmem:[%s1 + $0xe8] sm:$0xff]
      %v276 = vld [vmem:[%s1 + $0xf0] sm:$0xff]
      %v277 = vld [vmem:[%s1 + $0xf8] sm:$0xff]
      %v278 = vld [vmem:[%s1 + $0x100] sm:$0xff]
      %v279 = vld [vmem:[%s1 + $0x108] sm:$0xff]
      %v280 = vld [vmem:[%s1 + $0x110] sm:$0xff]
      %v281 = vld [vmem:[%s1 + $0x118] sm:$0xff]
      %v282 = vld [vmem:[%s1 + $0x120] sm:$0xff]
      %v283 = vld [vmem:[%s1 + $0x128] sm:$0xff]
      %v284 = vld [vmem:[%s1 + $0x130] sm:$0xff]
      %v285 = vld [vmem:[%s1 + $0x138] sm:$0xff]
      %v286 = vld [vmem:[%s1 + $0x140] sm:$0xff]
      %v287 = vld [vmem:[%s1 + $0x148] sm:$0xff]
      %v288 = vld [vmem:[%s1 + $0x150] sm:$0xff]
      %v289 = vld [vmem:[%s1 + $0x158] sm:$0xff]
      %v290 = vld [vmem:[%s1 + $0x160] sm:$0xff]
      %v291 = vld [vmem:[%s1 + $0x168] sm:$0xff]
      %v292 = vld [vmem:[%s1 + $0x170] sm:$0xff]
      %v293 = vld [vmem:[%s1 + $0x178] sm:$0xff]
      %v294 = vld [vmem:[%s1 + $0x180] sm:$0xff]
      %v295 = vld [vmem:[%s1 + $0x188] sm:$0xff]
      %v296 = vld [vmem:[%s1 + $0x190] sm:$0xff]
      %v297 = vld [vmem:[%s1 + $0x198] sm:$0xff]
      %v298 = vld [vmem:[%s1 + $0x1a0] sm:$0xff]
      %v299 = vld [vmem:[%s1 + $0x1a8] sm:$0xff]
      %v300 = vld [vmem:[%s1 + $0x1b0] sm:$0xff]
      %v301 = vld [vmem:[%s1 + $0x1b8] sm:$0xff]
      %v302 = vld [vmem:[%s1 + $0x1c0] sm:$0xff]
      %v303 = vld [vmem:[%s1 + $0x1c8] sm:$0xff]
      %v304 = vld [vmem:[%s1 + $0x1d0] sm:$0xff]
      %v305 = vld [vmem:[%s1 + $0x1d8] sm:$0xff]
      %v306 = vld [vmem:[%s1 + $0x1e0] sm:$0xff]
      %v307 = vld [vmem:[%s1 + $0x1e8] sm:$0xff]
      %v308 = vld [vmem:[%s1 + $0x1f0] sm:$0xff]
      %v309 = vld [vmem:[%s1 + $0x1f8] sm:$0xff]
      %v310 = vld [vmem:[%s1 + $0x200] sm:$0xff]
      %v311 = vld [vmem:[%s1 + $0x208] sm:$0xff]
      %v312 = vld [vmem:[%s1 + $0x210] sm:$0xff]
      %v313 = vld [vmem:[%s1 + $0x218] sm:$0xff]
      %v314 = vld [vmem:[%s1 + $0x220] sm:$0xff]
      %v315 = vld [vmem:[%s1 + $0x228] sm:$0xff]
      %v316 = vld [vmem:[%s1 + $0x230] sm:$0xff]
      %v317 = vld [vmem:[%s1 + $0x238] sm:$0xff]
      %v318 = vld [vmem:[%s1 + $0x240] sm:$0xff]
      %v319 = vld [vmem:[%s1 + $0x248] sm:$0xff]
      %v320 = vld [vmem:[%s1 + $0x250] sm:$0xff]
      %v321 = vld [vmem:[%s1 + $0x258] sm:$0xff]
      %v322 = vld [vmem:[%s1 + $0x260] sm:$0xff]
      %v323 = vld [vmem:[%s1 + $0x268] sm:$0xff]
      %v324 = vld [vmem:[%s1 + $0x270] sm:$0xff]
      %v325 = vld [vmem:[%s1 + $0x278] sm:$0xff]
      %v326 = vld [vmem:[%s2] sm:$0x1]
      %v328 = vlaneseq
      %v329 = vshrl.u32 %v328, 7
      %v330 = vsub.s32 0, %v329
      %v331 = vrot.slane %v326, %v330
      %333 = vmatprep.subr.mxu0 0.0
      %334 = vmatpush1.msra.mxu0 %v261
      %335 = vmatprep.subr.mxu0 0.0
      %336 = vmatpush1.msra.mxu0 %v260
      %337 = vmatprep.subr.mxu0 0.0
      %338 = vmatpush1.msra.mxu0 %v259
      %339 = vmatprep.subr.mxu0 0.0
      %340 = vmatpush1.msra.mxu0 %v258
      %341 = vmatprep.subr.mxu0 0.0
      %342 = vmatpush1.msra.mxu0 %v257
      %343 = vmatprep.subr.mxu0 0.0
      %344 = vmatpush1.msra.mxu0 %v256
      %345 = vmatprep.subr.mxu0 0.0
      %346 = vmatpush1.msra.mxu0 %v255
      %347 = vmatprep.subr.mxu0 0.0
      %348 = vmatpush1.msra.mxu0 %v254
      %349 = vmatprep.subr.mxu0 0.0
      %350 = vmatpush1.msra.mxu0 %v253
      %351 = vmatprep.subr.mxu0 0.0
      %352 = vmatpush1.msra.mxu0 %v252
      %353 = vmatprep.subr.mxu0 0.0
      %354 = vmatpush1.msra.mxu0 %v251
      %355 = vmatprep.subr.mxu0 0.0
      %356 = vmatpush1.msra.mxu0 %v250
      %357 = vmatprep.subr.mxu0 0.0
      %358 = vmatpush1.msra.mxu0 %v249
      %359 = vmatprep.subr.mxu0 0.0
      %360 = vmatpush1.msra.mxu0 %v248
      %361 = vmatprep.subr.mxu0 0.0
      %362 = vmatpush1.msra.mxu0 %v247
      %363 = vmatprep.subr.mxu0 0.0
      %364 = vmatpush1.msra.mxu0 %v246
      %365 = vmatprep.subr.mxu0 0.0
      %366 = vmatpush2.msra.mxu0 %v277
      %367 = vmatprep.subr.mxu0 0.0
      %368 = vmatpush2.msra.mxu0 %v276
      %369 = vmatprep.subr.mxu0 0.0
      %370 = vmatpush2.msra.mxu0 %v275
      %371 = vmatprep.subr.mxu0 0.0
      %372 = vmatpush2.msra.mxu0 %v274
      %373 = vmatprep.subr.mxu0 0.0
      %374 = vmatpush2.msra.mxu0 %v273
      %375 = vmatprep.subr.mxu0 0.0
      %376 = vmatpush2.msra.mxu0 %v272
      %377 = vmatprep.subr.mxu0 0.0
      %378 = vmatpush2.msra.mxu0 %v271
      %379 = vmatprep.subr.mxu0 0.0
      %380 = vmatpush2.msra.mxu0 %v270
      %381 = vmatprep.subr.mxu0 0.0
      %382 = vmatpush2.msra.mxu0 %v269
      %383 = vmatprep.subr.mxu0 0.0
      %384 = vmatpush2.msra.mxu0 %v268
      %385 = vmatprep.subr.mxu0 0.0
      %386 = vmatpush2.msra.mxu0 %v267
      %387 = vmatprep.subr.mxu0 0.0
      %388 = vmatpush2.msra.mxu0 %v266
      %389 = vmatprep.subr.mxu0 0.0
      %390 = vmatpush2.msra.mxu0 %v265
      %391 = vmatprep.subr.mxu0 0.0
      %392 = vmatpush2.msra.mxu0 %v264
      %393 = vmatprep.subr.mxu0 0.0
      %394 = vmatpush2.msra.mxu0 %v263
      %395 = vmatprep.subr.mxu0 0.0
      %396 = vmatpush2.msra.mxu0 %v262
      %397 = vmatprep.mubr.f32.mxu0 %v217
      %398 = vmatmul.mubr.f32.gmra.mxu0 %v208
      %v399 = vpop.f32.mrf.mxu0
      %v400 = vadd.f32 %v331, %v399
      %v401 = vpop.f32.mrf.mxu0
      %402 = vmatprep.mubr.f32.mxu0 %v219
      %403 = vmatmul.mubr.f32.gmra.mxu0 %v209
      %v404 = vpop.f32.mrf.mxu0
      %v405 = vadd.f32 %v331, %v404
      %v406 = vpop.f32.mrf.mxu0
      %407 = vdwg.mxu0
      %408 = vmatprep.subr.mxu0 0.0
      %409 = vmatpush1.msra.mxu0 %v293
      %410 = vmatprep.subr.mxu0 0.0
      %411 = vmatpush1.msra.mxu0 %v292
      %412 = vmatprep.subr.mxu0 0.0
      %413 = vmatpush1.msra.mxu0 %v291
      %414 = vmatprep.subr.mxu0 0.0
      %415 = vmatpush1.msra.mxu0 %v290
      %416 = vmatprep.subr.mxu0 0.0
      %417 = vmatpush1.msra.mxu0 %v289
      %418 = vmatprep.subr.mxu0 0.0
      %419 = vmatpush1.msra.mxu0 %v288
      %420 = vmatprep.subr.mxu0 0.0
      %421 = vmatpush1.msra.mxu0 %v287
      %422 = vmatprep.subr.mxu0 0.0
      %423 = vmatpush1.msra.mxu0 %v286
      %424 = vmatprep.subr.mxu0 0.0
      %425 = vmatpush1.msra.mxu0 %v285
      %426 = vmatprep.subr.mxu0 0.0
      %427 = vmatpush1.msra.mxu0 %v284
      %428 = vmatprep.subr.mxu0 0.0
      %429 = vmatpush1.msra.mxu0 %v283
      %430 = vmatprep.subr.mxu0 0.0
      %431 = vmatpush1.msra.mxu0 %v282
      %432 = vmatprep.subr.mxu0 0.0
      %433 = vmatpush1.msra.mxu0 %v281
      %434 = vmatprep.subr.mxu0 0.0
      %435 = vmatpush1.msra.mxu0 %v280
      %436 = vmatprep.subr.mxu0 0.0
      %437 = vmatpush1.msra.mxu0 %v279
      %438 = vmatprep.subr.mxu0 0.0
      %439 = vmatpush1.msra.mxu0 %v278
      %440 = vmatprep.subr.mxu0 0.0
      %441 = vmatpush2.msra.mxu0 %v309
      %442 = vmatprep.subr.mxu0 0.0
      %443 = vmatpush2.msra.mxu0 %v308
      %444 = vmatprep.subr.mxu0 0.0
      %445 = vmatpush2.msra.mxu0 %v307
      %446 = vmatprep.subr.mxu0 0.0
      %447 = vmatpush2.msra.mxu0 %v306
      %448 = vmatprep.subr.mxu0 0.0
      %449 = vmatpush2.msra.mxu0 %v305
      %450 = vmatprep.subr.mxu0 0.0
      %451 = vmatpush2.msra.mxu0 %v304
      %452 = vmatprep.subr.mxu0 0.0
      %453 = vmatpush2.msra.mxu0 %v303
      %454 = vmatprep.subr.mxu0 0.0
      %455 = vmatpush2.msra.mxu0 %v302
      %456 = vmatprep.subr.mxu0 0.0
      %457 = vmatpush2.msra.mxu0 %v301
      %458 = vmatprep.subr.mxu0 0.0
      %459 = vmatpush2.msra.mxu0 %v300
      %460 = vmatprep.subr.mxu0 0.0
      %461 = vmatpush2.msra.mxu0 %v299
      %462 = vmatprep.subr.mxu0 0.0
      %463 = vmatpush2.msra.mxu0 %v298
      %464 = vmatprep.subr.mxu0 0.0
      %465 = vmatpush2.msra.mxu0 %v297
      %466 = vmatprep.subr.mxu0 0.0
      %467 = vmatpush2.msra.mxu0 %v296
      %468 = vmatprep.subr.mxu0 0.0
      %469 = vmatpush2.msra.mxu0 %v295
      %470 = vmatprep.subr.mxu0 0.0
      %471 = vmatpush2.msra.mxu0 %v294
      %472 = vmatprep.mubr.f32.mxu0 %v233
      %473 = vmatmul.mubr.f32.gmra.mxu0 %v225
      %v474 = vpop.f32.mrf.mxu0
      %v475 = vadd.f32 %v400, %v474
      %v476 = vpop.f32.mrf.mxu0
      %477 = vmatprep.mubr.f32.mxu0 %v235
      %478 = vmatmul.mubr.f32.gmra.mxu0 %v227
      %v479 = vpop.f32.mrf.mxu0
      %v480 = vadd.f32 %v405, %v479
      %v481 = vpop.f32.mrf.mxu0
      %482 = vdwg.mxu0
      %483 = vmatprep.subr.mxu0 0.0
      %484 = vmatpush1.msra.mxu0 %v325
      %485 = vmatprep.subr.mxu0 0.0
      %486 = vmatpush1.msra.mxu0 %v324
      %487 = vmatprep.subr.mxu0 0.0
      %488 = vmatpush1.msra.mxu0 %v323
      %489 = vmatprep.subr.mxu0 0.0
      %490 = vmatpush1.msra.mxu0 %v322
      %491 = vmatprep.subr.mxu0 0.0
      %492 = vmatpush1.msra.mxu0 %v321
      %493 = vmatprep.subr.mxu0 0.0
      %494 = vmatpush1.msra.mxu0 %v320
      %495 = vmatprep.subr.mxu0 0.0
      %496 = vmatpush1.msra.mxu0 %v319
      %497 = vmatprep.subr.mxu0 0.0
      %498 = vmatpush1.msra.mxu0 %v318
      %499 = vmatprep.subr.mxu0 0.0
      %500 = vmatpush1.msra.mxu0 %v317
      %501 = vmatprep.subr.mxu0 0.0
      %502 = vmatpush1.msra.mxu0 %v316
      %503 = vmatprep.subr.mxu0 0.0
      %504 = vmatpush1.msra.mxu0 %v315
      %505 = vmatprep.subr.mxu0 0.0
      %506 = vmatpush1.msra.mxu0 %v314
      %507 = vmatprep.subr.mxu0 0.0
      %508 = vmatpush1.msra.mxu0 %v313
      %509 = vmatprep.subr.mxu0 0.0
      %510 = vmatpush1.msra.mxu0 %v312
      %511 = vmatprep.subr.mxu0 0.0
      %512 = vmatpush1.msra.mxu0 %v311
      %513 = vmatprep.subr.mxu0 0.0
      %514 = vmatpush1.msra.mxu0 %v310
      %515 = vmatprep.subr.mxu0 0.0
      %516 = vmatpush2.msra.mxu0 0.0
      %517 = vmatprep.subr.mxu0 0.0
      %518 = vmatpush2.msra.mxu0 0.0
      %519 = vmatprep.subr.mxu0 0.0
      %520 = vmatpush2.msra.mxu0 0.0
      %521 = vmatprep.subr.mxu0 0.0
      %522 = vmatpush2.msra.mxu0 0.0
      %523 = vmatprep.subr.mxu0 0.0
      %524 = vmatpush2.msra.mxu0 0.0
      %525 = vmatprep.subr.mxu0 0.0
      %526 = vmatpush2.msra.mxu0 0.0
      %527 = vmatprep.subr.mxu0 0.0
      %528 = vmatpush2.msra.mxu0 0.0
      %529 = vmatprep.subr.mxu0 0.0
      %530 = vmatpush2.msra.mxu0 0.0
      %531 = vmatprep.subr.mxu0 0.0
      %532 = vmatpush2.msra.mxu0 0.0
      %533 = vmatprep.subr.mxu0 0.0
      %534 = vmatpush2.msra.mxu0 0.0
      %535 = vmatprep.subr.mxu0 0.0
      %536 = vmatpush2.msra.mxu0 0.0
      %537 = vmatprep.subr.mxu0 0.0
      %538 = vmatpush2.msra.mxu0 0.0
      %539 = vmatprep.subr.mxu0 0.0
      %540 = vmatpush2.msra.mxu0 0.0
      %541 = vmatprep.subr.mxu0 0.0
      %542 = vmatpush2.msra.mxu0 0.0
      %543 = vmatprep.subr.mxu0 0.0
      %544 = vmatpush2.msra.mxu0 0.0
      %545 = vmatprep.subr.mxu0 0.0
      %546 = vmatpush2.msra.mxu0 0.0
      %547 = vmatprep.mubr.f32.mxu0 0.0
      %548 = vmatmul.mubr.f32.gmra.mxu0 %v241
      %v549 = vpop.f32.mrf.mxu0
      %v550 = vadd.f32 %v475, %v549
      %v551 = vpop.f32.mrf.mxu0
      %552 = vmatprep.mubr.f32.mxu0 0.0
      %553 = vmatmul.mubr.f32.gmra.mxu0 %v243
      %v554 = vpop.f32.mrf.mxu0
      %v555 = vadd.f32 %v480, %v554
      %v556 = vpop.f32.mrf.mxu0
      %557 = vdwg.mxu0
      %558 = vst [vmem:[%s206] sm:$0xff] %v550
      %559 = vst [vmem:[%s206 + $0x8] sm:$0xff] %v555
      %s560 = smul.u32 2, %s19
      %p561 = scmp.lt.s32.totalorder %s18, 1
      %s562 = scalar_select %p561, %s18, 1
      %p563 = scmp.lt.s32.totalorder %s560, 5
      %s564 = scalar_select %p563, %s560, 5
      %s565 = smul.addr %s562, 6
      %s566 = sadd.s32 %s564, %s565
      %s567 = smul.addr %s566, 8
      %s568 = scalar_lea.vmem %s3, %s567
      // Predicated region
      $region33: #{conv_norm.1} parent=31 // pred_check
        %p569 = pneg %p116
      $region34: #{conv_norm.1} parent=31 // pred_check_branch
        %571 = sbr.rel (%p569) target = $region36
      $region35: #{conv_norm.1} parent=31 // pred_region
        %s572 = smul.u32 2, %s19
      $region36: #{conv_norm.1} parent=31 // pred_fallthru
        _
    $region32: #{conv_norm.1} parent=5 // pred_fallthru
      _
    %p573 = scmp.le.s32.totalorder 2, %s9
    // Predicated region
    $region37: #{conv_norm.1} parent=5 // pred_check
      %p574 = pneg %p573
    $region38: #{conv_norm.1} parent=5 // pred_check_branch
      %576 = sbr.rel (%p574) target = $region40
    $region39: #{conv_norm.1} parent=5 // pred_region
      %s577 = ssub.s32 %s9, 2
      // Predicated region
      $region41: #{conv_norm.1} parent=39 // pred_check
        %p578 = pneg %p122
      $region42: #{conv_norm.1} parent=39 // pred_check_branch
        %580 = sbr.rel (%p578) target = $region44
      $region43: #{conv_norm.1} parent=39 // pred_region
        %s581 = smul.u32 2, %s21
        %p582 = scmp.lt.s32.totalorder %s20, 1
        %s583 = scalar_select %p582, %s20, 1
        %p584 = scmp.lt.s32.totalorder %s581, 5
        %s585 = scalar_select %p584, %s581, 5
        %s586 = smul.addr %s583, 6
        %s587 = sadd.s32 %s585, %s586
        %s588 = smul.addr %s587, 8
        %s589 = scalar_lea.vmem %s3, %s588
      $region44: #{conv_norm.1} parent=39 // pred_fallthru
        _
    $region40: #{conv_norm.1} parent=5 // pred_fallthru
      _
  $region6: #{conv_norm.1} parent=0 // loop_footer
    %s13 = sadd.s32 1, %s9
  $region7: #{conv_norm.1} parent=0 // loop_footer_branch
    %8 = sbr.rel target = $region3
  $region8: #{conv_norm.1} parent=0 // loop_exit
    _

</llo_original>
